<compile_context>
chip_gen: v6e
topology: v6e:2x2x1
jax: 0.10.0
libtpu: 0.0.40
codegen_flags: <defaults>
</compile_context>

<pallas_src>
import jax
import jax.numpy as jnp
import numpy as np
from jax import lax
from jax.experimental import pallas as pl
from jax.experimental.pallas import tpu as pltpu

BN_EPS = 1e-5


def convblock_forward(x, params):
    """x: (N, Cin, H, W) float32 (NCHW).  Returns (N, Cout, Ho, Wo) NCHW.

    Conv2d(Cin, Cout, kernel_size=3, stride=2, padding=1, bias=False)
    + BatchNorm2d(Cout) in training mode (batch statistics, biased variance)
    + ReLU.
    """
    w_conv = params["w_conv"]            # (Cout, Cin, 3, 3), OIHW
    gamma = params["bn_gamma"]           # (Cout,)
    beta = params["bn_beta"]             # (Cout,)

    N, Cin, H, W = x.shape
    Cout = w_conv.shape[0]
    assert H % 2 == 0 and W % 2 == 0, "stride-2 parity split assumes even H, W"
    Ho, Wo = H // 2, W // 2              # == floor((H + 2 - 3)/2) + 1 for even H
    Hp2, Wp2 = (H + 2) // 2, (W + 2) // 2
    HoWo = Ho * Wo
    NHW = N * HoWo

    # ---- tiny XLA-side layout prep (~10 KB, fused into the input pipeline) --
    # NCHW -> NHWC, 1-px zero halo, split each spatial axis into (half, parity)
    # and move the parities to the front:
    #     xps[py*2+px, n, i, j, c] == xpad[n, 2*i + py, 2*j + px, c]
    # so every 3x3/stride-2 tap is a static unit-stride slice inside the kernel.
    x_nhwc = jnp.transpose(x, (0, 2, 3, 1))
    xpad = jnp.pad(x_nhwc, ((0, 0), (1, 1), (1, 1), (0, 0)))
    xps = (xpad.reshape(N, Hp2, 2, Wp2, 2, Cin)
               .transpose(2, 4, 0, 1, 3, 5)
               .reshape(4, N, Hp2, Wp2, Cin))

    # Conv weight as a single (Cout, 9*Cin) GEMM operand; K index =
    # (dy*3 + dx)*Cin + ci, matching the im2col column order in the kernel.
    w2d = jnp.transpose(w_conv, (0, 2, 3, 1)).reshape(Cout, 9 * Cin)

    # gamma/beta packed into one small operand -> a single input DMA.
    affine = jnp.stack([gamma, beta], axis=0).reshape(2, Cout, 1)

    def kernel(xps_ref, w_ref, affine_ref, out_ref):
        # im2col: nine static-slice taps, concatenated along the K (lane) axis.
        pieces = []
        for dy in range(3):
            qy, py = dy // 2, dy % 2          # dy = 2*qy + py
            for dx in range(3):
                qx, px = dx // 2, dx % 2      # dx = 2*qx + px
                patch = xps_ref[py * 2 + px, :, qy:qy + Ho, qx:qx + Wo, :]
                pieces.append(patch.reshape(NHW, Cin))       # (N*Ho*Wo, Cin)
        cols = jnp.concatenate(pieces, axis=1)               # (N*Ho*Wo, 9*Cin)

        # Single fused GEMM; channels on sublanes, flattened spatial on lanes.
        y = lax.dot_general(
            w_ref[...], cols,
            dimension_numbers=(((1,), (1,)), ((), ())),
            preferred_element_type=jnp.float32)              # (Cout, N*Ho*Wo)

        # Training-mode BatchNorm: per-channel stats over (N, Ho, Wo) == a
        # lane-axis reduction.  Two-pass biased variance (no E[x^2] - m^2).
        mean = jnp.mean(y, axis=1, keepdims=True)            # (Cout, 1)
        d = y - mean
        var = jnp.mean(d * d, axis=1, keepdims=True)         # biased, as BN
        gamma_v = affine_ref[0]                              # (Cout, 1)
        beta_v = affine_ref[1]                               # (Cout, 1)
        feat = d * lax.rsqrt(var + BN_EPS) * gamma_v + beta_v
        feat = jnp.maximum(feat, 0.0)                        # ReLU

        # NCHW-flat store: out[n, co, ho*Wo + wo]; lane-dense (Ho*Wo lanes).
        for n in range(N):
            out_ref[n] = feat[:, n * HoWo:(n + 1) * HoWo]

    cost = pl.CostEstimate(
        flops=2 * NHW * 9 * Cin * Cout + 8 * NHW * Cout,
        transcendentals=Cout,
        bytes_accessed=4 * (int(xps.size) + int(w2d.size) + int(affine.size)
                            + N * Cout * HoWo),
    )

    # Everything (input, cols, GEMM result) fits comfortably in VMEM at these
    # toy shapes, so a single grid step is used (see TODO above for scaling).
    out_flat = pl.pallas_call(
        kernel,
        out_shape=jax.ShapeDtypeStruct((N, Cout, HoWo), jnp.float32),
        grid=(1,),
        in_specs=[
            pl.BlockSpec(xps.shape, lambda i: (0, 0, 0, 0, 0)),
            pl.BlockSpec(w2d.shape, lambda i: (0, 0)),
            pl.BlockSpec(affine.shape, lambda i: (0, 0, 0)),
        ],
        out_specs=pl.BlockSpec((N, Cout, HoWo), lambda i: (0, 0, 0)),
        compiler_params=pltpu.CompilerParams(
            dimension_semantics=("arbitrary",)),
        cost_estimate=cost,
    )(xps, w2d, affine)

    # Free reshape (already channel-major / NCHW ordered): no output transpose.
    return out_flat.reshape(N, Cout, Ho, Wo)


def ref_forward(x, params):
    """Pure-JAX reference mirroring the PyTorch forward (train-mode BN)."""
    pre = lax.conv_general_dilated(
        x, params["w_conv"], window_strides=(2, 2), padding=((1, 1), (1, 1)),
        dimension_numbers=("NCHW", "OIHW", "NCHW"))
    mean = pre.mean(axis=(0, 2, 3), keepdims=True)
    var = pre.var(axis=(0, 2, 3), keepdims=True)          # biased, as BN uses
    g = params["bn_gamma"][None, :, None, None]
    b = params["bn_beta"][None, :, None, None]
    return jax.nn.relu(g * (pre - mean) * lax.rsqrt(var + BN_EPS) + b)


if __name__ == "__main__":
    # Small shapes consistent with the module: Convblock(in_c=4, out=8), k=3, s=2.
    N, CIN, H, W = 2, 4, 16, 16
    COUT = 8

    key = jax.random.PRNGKey(0)
    ks = jax.random.split(key, 4)
    x = jax.random.normal(ks[0], (N, CIN, H, W), jnp.float32)
    params = {
        "w_conv": 0.1 * jax.random.normal(ks[1], (COUT, CIN, 3, 3), jnp.float32),
        "bn_gamma": 1.0 + 0.1 * jax.random.normal(ks[2], (COUT,), jnp.float32),
        "bn_beta": 0.1 * jax.random.normal(ks[3], (COUT,), jnp.float32),
    }

    out = jax.block_until_ready(jax.jit(convblock_forward)(x, params))
    ref = jax.block_until_ready(ref_forward(x, params))
    np.testing.assert_allclose(np.asarray(out), np.asarray(ref),
                               rtol=1e-4, atol=1e-4)

    print("KERNEL_OK")
</pallas_src>

<mosaic_0001>
module attributes {stable_mosaic.version = 11 : i64} {
  func.func @kernel(%arg0: i32, %arg1: memref<4x2x9x9x4xf32, #tpu.memory_space<vmem>>, %arg2: memref<8x36xf32, #tpu.memory_space<vmem>>, %arg3: memref<2x8x1xf32, #tpu.memory_space<vmem>>, %arg4: memref<2x8x64xf32, #tpu.memory_space<vmem>>) attributes {dimension_semantics = [#tpu.dimension_semantics<arbitrary>], iteration_bounds = array<i64: 1>, scalar_prefetch = 0 : i64, scratch_operands = 0 : i64, tpu.core_type = #tpu.core_type<tc>, window_params = [{pipeline_mode = #tpu.pipeline_mode<synchronous>, transform_indices = @transform_0, window_bounds = array<i64: 4, 2, 9, 9, 4>}, {pipeline_mode = #tpu.pipeline_mode<synchronous>, transform_indices = @transform_1, window_bounds = array<i64: 8, 36>}, {pipeline_mode = #tpu.pipeline_mode<synchronous>, transform_indices = @transform_2, window_bounds = array<i64: 2, 8, 1>}, {pipeline_mode = #tpu.pipeline_mode<synchronous>, transform_indices = @transform_3, window_bounds = array<i64: 2, 8, 64>}]} {
    %c0 = arith.constant 0 : index
    %c0_0 = arith.constant 0 : index
    %c0_1 = arith.constant 0 : index
    %c0_2 = arith.constant 0 : index
    %c0_3 = arith.constant 0 : index
    %0 = vector.load %arg1[%c0, %c0_0, %c0_1, %c0_2, %c0_3] : memref<4x2x9x9x4xf32, #tpu.memory_space<vmem>>, vector<1x2x8x8x4xf32>
    %1 = vector.shape_cast %0 : vector<1x2x8x8x4xf32> to vector<2x8x8x4xf32>
    %2 = vector.shape_cast %1 : vector<2x8x8x4xf32> to vector<128x4xf32>
    %c1 = arith.constant 1 : index
    %c0_4 = arith.constant 0 : index
    %c0_5 = arith.constant 0 : index
    %c0_6 = arith.constant 0 : index
    %c0_7 = arith.constant 0 : index
    %3 = vector.load %arg1[%c1, %c0_4, %c0_5, %c0_6, %c0_7] : memref<4x2x9x9x4xf32, #tpu.memory_space<vmem>>, vector<1x2x8x8x4xf32>
    %4 = vector.shape_cast %3 : vector<1x2x8x8x4xf32> to vector<2x8x8x4xf32>
    %5 = vector.shape_cast %4 : vector<2x8x8x4xf32> to vector<128x4xf32>
    %c0_8 = arith.constant 0 : index
    %c0_9 = arith.constant 0 : index
    %c0_10 = arith.constant 0 : index
    %c1_11 = arith.constant 1 : index
    %c0_12 = arith.constant 0 : index
    %6 = vector.load %arg1[%c0_8, %c0_9, %c0_10, %c1_11, %c0_12] : memref<4x2x9x9x4xf32, #tpu.memory_space<vmem>>, vector<1x2x8x8x4xf32>
    %7 = vector.shape_cast %6 : vector<1x2x8x8x4xf32> to vector<2x8x8x4xf32>
    %8 = vector.shape_cast %7 : vector<2x8x8x4xf32> to vector<128x4xf32>
    %c2 = arith.constant 2 : index
    %c0_13 = arith.constant 0 : index
    %c0_14 = arith.constant 0 : index
    %c0_15 = arith.constant 0 : index
    %c0_16 = arith.constant 0 : index
    %9 = vector.load %arg1[%c2, %c0_13, %c0_14, %c0_15, %c0_16] : memref<4x2x9x9x4xf32, #tpu.memory_space<vmem>>, vector<1x2x8x8x4xf32>
    %10 = vector.shape_cast %9 : vector<1x2x8x8x4xf32> to vector<2x8x8x4xf32>
    %11 = vector.shape_cast %10 : vector<2x8x8x4xf32> to vector<128x4xf32>
    %c3 = arith.constant 3 : index
    %c0_17 = arith.constant 0 : index
    %c0_18 = arith.constant 0 : index
    %c0_19 = arith.constant 0 : index
    %c0_20 = arith.constant 0 : index
    %12 = vector.load %arg1[%c3, %c0_17, %c0_18, %c0_19, %c0_20] : memref<4x2x9x9x4xf32, #tpu.memory_space<vmem>>, vector<1x2x8x8x4xf32>
    %13 = vector.shape_cast %12 : vector<1x2x8x8x4xf32> to vector<2x8x8x4xf32>
    %14 = vector.shape_cast %13 : vector<2x8x8x4xf32> to vector<128x4xf32>
    %c2_21 = arith.constant 2 : index
    %c0_22 = arith.constant 0 : index
    %c0_23 = arith.constant 0 : index
    %c1_24 = arith.constant 1 : index
    %c0_25 = arith.constant 0 : index
    %15 = vector.load %arg1[%c2_21, %c0_22, %c0_23, %c1_24, %c0_25] : memref<4x2x9x9x4xf32, #tpu.memory_space<vmem>>, vector<1x2x8x8x4xf32>
    %16 = vector.shape_cast %15 : vector<1x2x8x8x4xf32> to vector<2x8x8x4xf32>
    %17 = vector.shape_cast %16 : vector<2x8x8x4xf32> to vector<128x4xf32>
    %c0_26 = arith.constant 0 : index
    %c0_27 = arith.constant 0 : index
    %c1_28 = arith.constant 1 : index
    %c0_29 = arith.constant 0 : index
    %c0_30 = arith.constant 0 : index
    %18 = vector.load %arg1[%c0_26, %c0_27, %c1_28, %c0_29, %c0_30] : memref<4x2x9x9x4xf32, #tpu.memory_space<vmem>>, vector<1x2x8x8x4xf32>
    %19 = vector.shape_cast %18 : vector<1x2x8x8x4xf32> to vector<2x8x8x4xf32>
    %20 = vector.shape_cast %19 : vector<2x8x8x4xf32> to vector<128x4xf32>
    %c1_31 = arith.constant 1 : index
    %c0_32 = arith.constant 0 : index
    %c1_33 = arith.constant 1 : index
    %c0_34 = arith.constant 0 : index
    %c0_35 = arith.constant 0 : index
    %21 = vector.load %arg1[%c1_31, %c0_32, %c1_33, %c0_34, %c0_35] : memref<4x2x9x9x4xf32, #tpu.memory_space<vmem>>, vector<1x2x8x8x4xf32>
    %22 = vector.shape_cast %21 : vector<1x2x8x8x4xf32> to vector<2x8x8x4xf32>
    %23 = vector.shape_cast %22 : vector<2x8x8x4xf32> to vector<128x4xf32>
    %c0_36 = arith.constant 0 : index
    %c0_37 = arith.constant 0 : index
    %c1_38 = arith.constant 1 : index
    %c1_39 = arith.constant 1 : index
    %c0_40 = arith.constant 0 : index
    %24 = vector.load %arg1[%c0_36, %c0_37, %c1_38, %c1_39, %c0_40] : memref<4x2x9x9x4xf32, #tpu.memory_space<vmem>>, vector<1x2x8x8x4xf32>
    %25 = vector.shape_cast %24 : vector<1x2x8x8x4xf32> to vector<2x8x8x4xf32>
    %26 = vector.shape_cast %25 : vector<2x8x8x4xf32> to vector<128x4xf32>
    %27 = tpu.concatenate %2, %5, %8, %11, %14, %17, %20, %23, %26 in 1 : vector<128x4xf32>, vector<128x4xf32>, vector<128x4xf32>, vector<128x4xf32>, vector<128x4xf32>, vector<128x4xf32>, vector<128x4xf32>, vector<128x4xf32>, vector<128x4xf32> -> vector<128x36xf32>
    %c0_41 = arith.constant 0 : index
    %c0_42 = arith.constant 0 : index
    %28 = vector.load %arg2[%c0_41, %c0_42] : memref<8x36xf32, #tpu.memory_space<vmem>>, vector<8x36xf32>
    %cst = arith.constant dense<0.000000e+00> : vector<8x128xf32>
    %29 = tpu.matmul %28, %27, %cst {dimension_numbers = #tpu.dot_dimension_numbers<[1], [1], [0], [0], [0, 0, 1, 0], [], []>} : vector<8x36xf32>, vector<128x36xf32>, vector<8x128xf32> -> vector<8x128xf32>
    %cst_43 = arith.constant dense<0.000000e+00> : vector<8xf32>
    %30 = vector.multi_reduction <add>, %29, %cst_43 [1] : vector<8x128xf32> to vector<8xf32>
    %31 = vector.shape_cast %30 : vector<8xf32> to vector<8x1xf32>
    %cst_44 = arith.constant 1.280000e+02 : f32
    %32 = vector.broadcast %cst_44 : f32 to vector<8x1xf32>
    %33 = arith.divf %31, %32 : vector<8x1xf32>
    %34 = vector.broadcast %33 : vector<8x1xf32> to vector<8x128xf32>
    %35 = arith.subf %29, %34 : vector<8x128xf32>
    %36 = arith.mulf %35, %35 : vector<8x128xf32>
    %cst_45 = arith.constant dense<0.000000e+00> : vector<8xf32>
    %37 = vector.multi_reduction <add>, %36, %cst_45 [1] : vector<8x128xf32> to vector<8xf32>
    %38 = vector.shape_cast %37 : vector<8xf32> to vector<8x1xf32>
    %cst_46 = arith.constant 1.280000e+02 : f32
    %39 = vector.broadcast %cst_46 : f32 to vector<8x1xf32>
    %40 = arith.divf %38, %39 : vector<8x1xf32>
    %c0_47 = arith.constant 0 : index
    %c0_48 = arith.constant 0 : index
    %c0_49 = arith.constant 0 : index
    %41 = vector.load %arg3[%c0_47, %c0_48, %c0_49] : memref<2x8x1xf32, #tpu.memory_space<vmem>>, vector<1x8x1xf32>
    %42 = vector.shape_cast %41 : vector<1x8x1xf32> to vector<8x1xf32>
    %c1_50 = arith.constant 1 : index
    %c0_51 = arith.constant 0 : index
    %c0_52 = arith.constant 0 : index
    %43 = vector.load %arg3[%c1_50, %c0_51, %c0_52] : memref<2x8x1xf32, #tpu.memory_space<vmem>>, vector<1x8x1xf32>
    %44 = vector.shape_cast %43 : vector<1x8x1xf32> to vector<8x1xf32>
    %cst_53 = arith.constant 9.99999974E-6 : f32
    %45 = vector.broadcast %cst_53 : f32 to vector<8x1xf32>
    %46 = arith.addf %40, %45 : vector<8x1xf32>
    %47 = math.rsqrt %46 : vector<8x1xf32>
    %48 = vector.broadcast %47 : vector<8x1xf32> to vector<8x128xf32>
    %49 = arith.mulf %35, %48 : vector<8x128xf32>
    %50 = vector.broadcast %42 : vector<8x1xf32> to vector<8x128xf32>
    %51 = arith.mulf %49, %50 : vector<8x128xf32>
    %52 = vector.broadcast %44 : vector<8x1xf32> to vector<8x128xf32>
    %53 = arith.addf %51, %52 : vector<8x128xf32>
    %cst_54 = arith.constant 0.000000e+00 : f32
    %54 = vector.broadcast %cst_54 : f32 to vector<8x128xf32>
    %55 = arith.maximumf %53, %54 : vector<8x128xf32>
    %56 = vector.extract_strided_slice %55 {offsets = [0, 0], sizes = [8, 64], strides = [1, 1]} : vector<8x128xf32> to vector<8x64xf32>
    %c0_55 = arith.constant 0 : index
    %c0_56 = arith.constant 0 : index
    %c0_57 = arith.constant 0 : index
    %57 = vector.load %arg4[%c0_55, %c0_56, %c0_57] : memref<2x8x64xf32, #tpu.memory_space<vmem>>, vector<1x8x64xf32>
    %58 = vector.shape_cast %57 : vector<1x8x64xf32> to vector<8x64xf32>
    %59 = vector.shape_cast %56 : vector<8x64xf32> to vector<1x8x64xf32>
    tpu.vector_store %arg4[%c0_55, %c0_56, %c0_57], %59 {strides = array<i32>} : memref<2x8x64xf32, #tpu.memory_space<vmem>>, vector<1x8x64xf32>,
    %60 = vector.extract_strided_slice %55 {offsets = [0, 64], sizes = [8, 64], strides = [1, 1]} : vector<8x128xf32> to vector<8x64xf32>
    %c1_58 = arith.constant 1 : index
    %c0_59 = arith.constant 0 : index
    %c0_60 = arith.constant 0 : index
    %61 = vector.load %arg4[%c1_58, %c0_59, %c0_60] : memref<2x8x64xf32, #tpu.memory_space<vmem>>, vector<1x8x64xf32>
    %62 = vector.shape_cast %61 : vector<1x8x64xf32> to vector<8x64xf32>
    %63 = vector.shape_cast %60 : vector<8x64xf32> to vector<1x8x64xf32>
    tpu.vector_store %arg4[%c1_58, %c0_59, %c0_60], %63 {strides = array<i32>} : memref<2x8x64xf32, #tpu.memory_space<vmem>>, vector<1x8x64xf32>,
    return
  }
  func.func @transform_0(%arg0: i32) -> (i32, i32, i32, i32, i32) {
    %c0_i32 = arith.constant 0 : i32
    %c0_i32_0 = arith.constant 0 : i32
    %c0_i32_1 = arith.constant 0 : i32
    %c0_i32_2 = arith.constant 0 : i32
    %c0_i32_3 = arith.constant 0 : i32
    %c0_i32_4 = arith.constant 0 : i32
    return %c0_i32, %c0_i32_0, %c0_i32_1, %c0_i32_2, %c0_i32_3 : i32, i32, i32, i32, i32
  }
  func.func @transform_1(%arg0: i32) -> (i32, i32) {
    %c0_i32 = arith.constant 0 : i32
    %c0_i32_0 = arith.constant 0 : i32
    %c0_i32_1 = arith.constant 0 : i32
    return %c0_i32, %c0_i32_0 : i32, i32
  }
  func.func @transform_2(%arg0: i32) -> (i32, i32, i32) {
    %c0_i32 = arith.constant 0 : i32
    %c0_i32_0 = arith.constant 0 : i32
    %c0_i32_1 = arith.constant 0 : i32
    %c0_i32_2 = arith.constant 0 : i32
    return %c0_i32, %c0_i32_0, %c0_i32_1 : i32, i32, i32
  }
  func.func @transform_3(%arg0: i32) -> (i32, i32, i32) {
    %c0_i32 = arith.constant 0 : i32
    %c0_i32_0 = arith.constant 0 : i32
    %c0_i32_1 = arith.constant 0 : i32
    %c0_i32_2 = arith.constant 0 : i32
    return %c0_i32, %c0_i32_0, %c0_i32_1 : i32, i32, i32
  }
}

</mosaic_0001>

<llo_original>
// kernel: convblock_forward.1
$region0: #{convblock_forward.1}
  #allocation0 [shape = 'u32[]', space=smem, size = 0x4, offset = 0x4, fixed_abs, tag = 'smem constant byte address 0x4 - core index']
  #allocation1 [shape = 'u32[144,128]{1,0:T(1,128)}', space=vmem, size = 0x12000, scoped, tag = 'internal scratch']
  %s0 = inlined_call_operand.vmem [shape: f32[4,2,9,9,4], index: 0, kind: input, shape index: {}]
  %s1 = inlined_call_operand.vmem [shape: f32[8,36], index: 1, kind: input, shape index: {}]
  %s2 = inlined_call_operand.vmem [shape: f32[2,8,1], index: 2, kind: input, shape index: {}]
  %s3 = inlined_call_operand.vmem [shape: f32[2,8,64], index: 3, kind: output, shape index: {}]
  %s4 = sld [smem:[#allocation0]]
  $region22: #{convblock_forward.1} parent=0
    _
  %s6 = ssub.s32 1, %s4
  %s7 = scalar_select 0, %s6, %s4
  // Predicated region
  $region2: #{convblock_forward.1} parent=0 // pred_check
    _
  $region3: #{convblock_forward.1} parent=0 // pred_check_branch
    %9 = sbr.rel (0) target = $region5
  $region4: #{convblock_forward.1} parent=0 // pred_region
    _
  $region5: #{convblock_forward.1} parent=0 // pred_fallthru
    _
  // Predicated region
  $region6: #{convblock_forward.1} parent=0 // pred_check
    _
  $region7: #{convblock_forward.1} parent=0 // pred_check_branch
    %11 = sbr.rel (0) target = $region9
  $region8: #{convblock_forward.1} parent=0 // pred_region
    _
  $region9: #{convblock_forward.1} parent=0 // pred_fallthru
    _
  // Predicated region
  $region10: #{convblock_forward.1} parent=0 // pred_check
    _
  $region11: #{convblock_forward.1} parent=0 // pred_check_branch
    %13 = sbr.rel (0) target = $region13
  $region12: #{convblock_forward.1} parent=0 // pred_region
    _
  $region13: #{convblock_forward.1} parent=0 // pred_fallthru
    _
  %v14 = vld [vmem:[%s0] sm:$0xff]
  %v15 = vld [vmem:[%s0 + $0x10] sm:$0xff]
  %v16 = vld [vmem:[%s0 + $0x20] sm:$0xff]
  %v17 = vld [vmem:[%s0 + $0x30] sm:$0xff]
  %v18 = vld [vmem:[%s0 + $0x40] sm:$0xff]
  %v19 = vld [vmem:[%s0 + $0x50] sm:$0xff]
  %v20 = vld [vmem:[%s0 + $0x60] sm:$0xff]
  %v21 = vld [vmem:[%s0 + $0x70] sm:$0xff]
  %v22 = vld [vmem:[%s0 + $0x90] sm:$0xff]
  %v23 = vld [vmem:[%s0 + $0xa0] sm:$0xff]
  %v24 = vld [vmem:[%s0 + $0xb0] sm:$0xff]
  %v25 = vld [vmem:[%s0 + $0xc0] sm:$0xff]
  %v26 = vld [vmem:[%s0 + $0xd0] sm:$0xff]
  %v27 = vld [vmem:[%s0 + $0xe0] sm:$0xff]
  %v28 = vld [vmem:[%s0 + $0xf0] sm:$0xff]
  %v29 = vld [vmem:[%s0 + $0x100] sm:$0xff]
  %s30 = scalar_lea.vmem %s0, 288
  %v31 = vld [vmem:[%s30] sm:$0xff]
  %v32 = vld [vmem:[%s30 + $0x10] sm:$0xff]
  %v33 = vld [vmem:[%s30 + $0x20] sm:$0xff]
  %v34 = vld [vmem:[%s30 + $0x30] sm:$0xff]
  %v35 = vld [vmem:[%s30 + $0x40] sm:$0xff]
  %v36 = vld [vmem:[%s30 + $0x50] sm:$0xff]
  %v37 = vld [vmem:[%s30 + $0x60] sm:$0xff]
  %v38 = vld [vmem:[%s30 + $0x70] sm:$0xff]
  %v39 = vld [vmem:[%s30 + $0x90] sm:$0xff]
  %v40 = vld [vmem:[%s30 + $0xa0] sm:$0xff]
  %v41 = vld [vmem:[%s30 + $0xb0] sm:$0xff]
  %v42 = vld [vmem:[%s30 + $0xc0] sm:$0xff]
  %v43 = vld [vmem:[%s30 + $0xd0] sm:$0xff]
  %v44 = vld [vmem:[%s30 + $0xe0] sm:$0xff]
  %v45 = vld [vmem:[%s30 + $0xf0] sm:$0xff]
  %v46 = vld [vmem:[%s30 + $0x100] sm:$0xff]
  %v47 = vld [vmem:[%s0 + $0x1] sm:$0xff]
  %v48 = vld [vmem:[%s0 + $0x11] sm:$0xff]
  %v49 = vld [vmem:[%s0 + $0x21] sm:$0xff]
  %v50 = vld [vmem:[%s0 + $0x31] sm:$0xff]
  %v51 = vld [vmem:[%s0 + $0x41] sm:$0xff]
  %v52 = vld [vmem:[%s0 + $0x51] sm:$0xff]
  %v53 = vld [vmem:[%s0 + $0x61] sm:$0xff]
  %v54 = vld [vmem:[%s0 + $0x71] sm:$0xff]
  %v55 = vld [vmem:[%s0 + $0x91] sm:$0xff]
  %v56 = vld [vmem:[%s0 + $0xa1] sm:$0xff]
  %v57 = vld [vmem:[%s0 + $0xb1] sm:$0xff]
  %v58 = vld [vmem:[%s0 + $0xc1] sm:$0xff]
  %v59 = vld [vmem:[%s0 + $0xd1] sm:$0xff]
  %v60 = vld [vmem:[%s0 + $0xe1] sm:$0xff]
  %v61 = vld [vmem:[%s0 + $0xf1] sm:$0xff]
  %v62 = vld [vmem:[%s0 + $0x101] sm:$0xff]
  %s63 = scalar_lea.vmem %s0, 576
  %v64 = vld [vmem:[%s63] sm:$0xff]
  %v65 = vld [vmem:[%s63 + $0x10] sm:$0xff]
  %v66 = vld [vmem:[%s63 + $0x20] sm:$0xff]
  %v67 = vld [vmem:[%s63 + $0x30] sm:$0xff]
  %v68 = vld [vmem:[%s63 + $0x40] sm:$0xff]
  %v69 = vld [vmem:[%s63 + $0x50] sm:$0xff]
  %v70 = vld [vmem:[%s63 + $0x60] sm:$0xff]
  %v71 = vld [vmem:[%s63 + $0x70] sm:$0xff]
  %v72 = vld [vmem:[%s63 + $0x90] sm:$0xff]
  %v73 = vld [vmem:[%s63 + $0xa0] sm:$0xff]
  %v74 = vld [vmem:[%s63 + $0xb0] sm:$0xff]
  %v75 = vld [vmem:[%s63 + $0xc0] sm:$0xff]
  %v76 = vld [vmem:[%s63 + $0xd0] sm:$0xff]
  %v77 = vld [vmem:[%s63 + $0xe0] sm:$0xff]
  %v78 = vld [vmem:[%s63 + $0xf0] sm:$0xff]
  %v79 = vld [vmem:[%s63 + $0x100] sm:$0xff]
  %s80 = scalar_lea.vmem %s0, 864
  %v81 = vld [vmem:[%s80] sm:$0xff]
  %v82 = vld [vmem:[%s80 + $0x10] sm:$0xff]
  %v83 = vld [vmem:[%s80 + $0x20] sm:$0xff]
  %v84 = vld [vmem:[%s80 + $0x30] sm:$0xff]
  %v85 = vld [vmem:[%s80 + $0x40] sm:$0xff]
  %v86 = vld [vmem:[%s80 + $0x50] sm:$0xff]
  %v87 = vld [vmem:[%s80 + $0x60] sm:$0xff]
  %v88 = vld [vmem:[%s80 + $0x70] sm:$0xff]
  %v89 = vld [vmem:[%s80 + $0x90] sm:$0xff]
  %v90 = vld [vmem:[%s80 + $0xa0] sm:$0xff]
  %v91 = vld [vmem:[%s80 + $0xb0] sm:$0xff]
  %v92 = vld [vmem:[%s80 + $0xc0] sm:$0xff]
  %v93 = vld [vmem:[%s80 + $0xd0] sm:$0xff]
  %v94 = vld [vmem:[%s80 + $0xe0] sm:$0xff]
  %v95 = vld [vmem:[%s80 + $0xf0] sm:$0xff]
  %v96 = vld [vmem:[%s80 + $0x100] sm:$0xff]
  %v97 = vld [vmem:[%s63 + $0x1] sm:$0xff]
  %v98 = vld [vmem:[%s63 + $0x11] sm:$0xff]
  %v99 = vld [vmem:[%s63 + $0x21] sm:$0xff]
  %v100 = vld [vmem:[%s63 + $0x31] sm:$0xff]
  %v101 = vld [vmem:[%s63 + $0x41] sm:$0xff]
  %v102 = vld [vmem:[%s63 + $0x51] sm:$0xff]
  %v103 = vld [vmem:[%s63 + $0x61] sm:$0xff]
  %v104 = vld [vmem:[%s63 + $0x71] sm:$0xff]
  %v105 = vld [vmem:[%s63 + $0x91] sm:$0xff]
  %v106 = vld [vmem:[%s63 + $0xa1] sm:$0xff]
  %v107 = vld [vmem:[%s63 + $0xb1] sm:$0xff]
  %v108 = vld [vmem:[%s63 + $0xc1] sm:$0xff]
  %v109 = vld [vmem:[%s63 + $0xd1] sm:$0xff]
  %v110 = vld [vmem:[%s63 + $0xe1] sm:$0xff]
  %v111 = vld [vmem:[%s63 + $0xf1] sm:$0xff]
  %v112 = vld [vmem:[%s63 + $0x101] sm:$0xff]
  %s113 = scalar_lea.vmem %s0, 16
  %v114 = vld [vmem:[%s113] sm:$0xff]
  %v115 = vld [vmem:[%s113 + $0x10] sm:$0xff]
  %v116 = vld [vmem:[%s113 + $0x20] sm:$0xff]
  %v117 = vld [vmem:[%s113 + $0x30] sm:$0xff]
  %v118 = vld [vmem:[%s113 + $0x40] sm:$0xff]
  %v119 = vld [vmem:[%s113 + $0x50] sm:$0xff]
  %v120 = vld [vmem:[%s113 + $0x60] sm:$0xff]
  %v121 = vld [vmem:[%s113 + $0x70] sm:$0xff]
  %v122 = vld [vmem:[%s113 + $0x90] sm:$0xff]
  %v123 = vld [vmem:[%s113 + $0xa0] sm:$0xff]
  %v124 = vld [vmem:[%s113 + $0xb0] sm:$0xff]
  %v125 = vld [vmem:[%s113 + $0xc0] sm:$0xff]
  %v126 = vld [vmem:[%s113 + $0xd0] sm:$0xff]
  %v127 = vld [vmem:[%s113 + $0xe0] sm:$0xff]
  %v128 = vld [vmem:[%s113 + $0xf0] sm:$0xff]
  %v129 = vld [vmem:[%s113 + $0x100] sm:$0xff]
  %s130 = scalar_lea.vmem %s0, 304
  %v131 = vld [vmem:[%s130] sm:$0xff]
  %v132 = vld [vmem:[%s130 + $0x10] sm:$0xff]
  %v133 = vld [vmem:[%s130 + $0x20] sm:$0xff]
  %v134 = vld [vmem:[%s130 + $0x30] sm:$0xff]
  %v135 = vld [vmem:[%s130 + $0x40] sm:$0xff]
  %v136 = vld [vmem:[%s130 + $0x50] sm:$0xff]
  %v137 = vld [vmem:[%s130 + $0x60] sm:$0xff]
  %v138 = vld [vmem:[%s130 + $0x70] sm:$0xff]
  %v139 = vld [vmem:[%s130 + $0x90] sm:$0xff]
  %v140 = vld [vmem:[%s130 + $0xa0] sm:$0xff]
  %v141 = vld [vmem:[%s130 + $0xb0] sm:$0xff]
  %v142 = vld [vmem:[%s130 + $0xc0] sm:$0xff]
  %v143 = vld [vmem:[%s130 + $0xd0] sm:$0xff]
  %v144 = vld [vmem:[%s130 + $0xe0] sm:$0xff]
  %v145 = vld [vmem:[%s130 + $0xf0] sm:$0xff]
  %v146 = vld [vmem:[%s130 + $0x100] sm:$0xff]
  %v147 = vld [vmem:[%s113 + $0x1] sm:$0xff]
  %v148 = vld [vmem:[%s113 + $0x11] sm:$0xff]
  %v149 = vld [vmem:[%s113 + $0x21] sm:$0xff]
  %v150 = vld [vmem:[%s113 + $0x31] sm:$0xff]
  %v151 = vld [vmem:[%s113 + $0x41] sm:$0xff]
  %v152 = vld [vmem:[%s113 + $0x51] sm:$0xff]
  %v153 = vld [vmem:[%s113 + $0x61] sm:$0xff]
  %v154 = vld [vmem:[%s113 + $0x71] sm:$0xff]
  %v155 = vld [vmem:[%s113 + $0x91] sm:$0xff]
  %v156 = vld [vmem:[%s113 + $0xa1] sm:$0xff]
  %v157 = vld [vmem:[%s113 + $0xb1] sm:$0xff]
  %v158 = vld [vmem:[%s113 + $0xc1] sm:$0xff]
  %v159 = vld [vmem:[%s113 + $0xd1] sm:$0xff]
  %v160 = vld [vmem:[%s113 + $0xe1] sm:$0xff]
  %v161 = vld [vmem:[%s113 + $0xf1] sm:$0xff]
  %v162 = vld [vmem:[%s113 + $0x101] sm:$0xff]
  %179 = vrot.lane.b32.xlu0 %v31, 4
  %v180 = vpop.permute.xlu0 %179
  %181 = vrot.lane.b32.xlu0 %v32, 4
  %v182 = vpop.permute.xlu0 %181
  %183 = vrot.lane.b32.xlu0 %v33, 4
  %v184 = vpop.permute.xlu0 %183
  %185 = vrot.lane.b32.xlu0 %v34, 4
  %v186 = vpop.permute.xlu0 %185
  %187 = vrot.lane.b32.xlu0 %v35, 4
  %v188 = vpop.permute.xlu0 %187
  %189 = vrot.lane.b32.xlu0 %v36, 4
  %v190 = vpop.permute.xlu0 %189
  %191 = vrot.lane.b32.xlu0 %v37, 4
  %v192 = vpop.permute.xlu0 %191
  %193 = vrot.lane.b32.xlu0 %v38, 4
  %v194 = vpop.permute.xlu0 %193
  %195 = vrot.lane.b32.xlu0 %v39, 4
  %v196 = vpop.permute.xlu0 %195
  %197 = vrot.lane.b32.xlu0 %v40, 4
  %v198 = vpop.permute.xlu0 %197
  %199 = vrot.lane.b32.xlu0 %v41, 4
  %v200 = vpop.permute.xlu0 %199
  %201 = vrot.lane.b32.xlu0 %v42, 4
  %v202 = vpop.permute.xlu0 %201
  %203 = vrot.lane.b32.xlu0 %v43, 4
  %v204 = vpop.permute.xlu0 %203
  %205 = vrot.lane.b32.xlu0 %v44, 4
  %v206 = vpop.permute.xlu0 %205
  %207 = vrot.lane.b32.xlu0 %v45, 4
  %v208 = vpop.permute.xlu0 %207
  %209 = vrot.lane.b32.xlu0 %v46, 4
  %v210 = vpop.permute.xlu0 %209
  %243 = vrot.lane.b32.xlu0 %v47, 8
  %v244 = vpop.permute.xlu0 %243
  %245 = vrot.lane.b32.xlu0 %v48, 8
  %v246 = vpop.permute.xlu0 %245
  %247 = vrot.lane.b32.xlu0 %v49, 8
  %v248 = vpop.permute.xlu0 %247
  %249 = vrot.lane.b32.xlu0 %v50, 8
  %v250 = vpop.permute.xlu0 %249
  %251 = vrot.lane.b32.xlu0 %v51, 8
  %v252 = vpop.permute.xlu0 %251
  %253 = vrot.lane.b32.xlu0 %v52, 8
  %v254 = vpop.permute.xlu0 %253
  %255 = vrot.lane.b32.xlu0 %v53, 8
  %v256 = vpop.permute.xlu0 %255
  %257 = vrot.lane.b32.xlu0 %v54, 8
  %v258 = vpop.permute.xlu0 %257
  %259 = vrot.lane.b32.xlu0 %v55, 8
  %v260 = vpop.permute.xlu0 %259
  %261 = vrot.lane.b32.xlu0 %v56, 8
  %v262 = vpop.permute.xlu0 %261
  %263 = vrot.lane.b32.xlu0 %v57, 8
  %v264 = vpop.permute.xlu0 %263
  %265 = vrot.lane.b32.xlu0 %v58, 8
  %v266 = vpop.permute.xlu0 %265
  %267 = vrot.lane.b32.xlu0 %v59, 8
  %v268 = vpop.permute.xlu0 %267
  %269 = vrot.lane.b32.xlu0 %v60, 8
  %v270 = vpop.permute.xlu0 %269
  %271 = vrot.lane.b32.xlu0 %v61, 8
  %v272 = vpop.permute.xlu0 %271
  %273 = vrot.lane.b32.xlu0 %v62, 8
  %v274 = vpop.permute.xlu0 %273
  %307 = vrot.lane.b32.xlu0 %v64, 12
  %v308 = vpop.permute.xlu0 %307
  %309 = vrot.lane.b32.xlu0 %v65, 12
  %v310 = vpop.permute.xlu0 %309
  %311 = vrot.lane.b32.xlu0 %v66, 12
  %v312 = vpop.permute.xlu0 %311
  %313 = vrot.lane.b32.xlu0 %v67, 12
  %v314 = vpop.permute.xlu0 %313
  %315 = vrot.lane.b32.xlu0 %v68, 12
  %v316 = vpop.permute.xlu0 %315
  %317 = vrot.lane.b32.xlu0 %v69, 12
  %v318 = vpop.permute.xlu0 %317
  %319 = vrot.lane.b32.xlu0 %v70, 12
  %v320 = vpop.permute.xlu0 %319
  %321 = vrot.lane.b32.xlu0 %v71, 12
  %v322 = vpop.permute.xlu0 %321
  %323 = vrot.lane.b32.xlu0 %v72, 12
  %v324 = vpop.permute.xlu0 %323
  %325 = vrot.lane.b32.xlu0 %v73, 12
  %v326 = vpop.permute.xlu0 %325
  %327 = vrot.lane.b32.xlu0 %v74, 12
  %v328 = vpop.permute.xlu0 %327
  %329 = vrot.lane.b32.xlu0 %v75, 12
  %v330 = vpop.permute.xlu0 %329
  %331 = vrot.lane.b32.xlu0 %v76, 12
  %v332 = vpop.permute.xlu0 %331
  %333 = vrot.lane.b32.xlu0 %v77, 12
  %v334 = vpop.permute.xlu0 %333
  %335 = vrot.lane.b32.xlu0 %v78, 12
  %v336 = vpop.permute.xlu0 %335
  %337 = vrot.lane.b32.xlu0 %v79, 12
  %v338 = vpop.permute.xlu0 %337
  %371 = vrot.lane.b32.xlu0 %v81, 16
  %v372 = vpop.permute.xlu0 %371
  %373 = vrot.lane.b32.xlu0 %v82, 16
  %v374 = vpop.permute.xlu0 %373
  %375 = vrot.lane.b32.xlu0 %v83, 16
  %v376 = vpop.permute.xlu0 %375
  %377 = vrot.lane.b32.xlu0 %v84, 16
  %v378 = vpop.permute.xlu0 %377
  %379 = vrot.lane.b32.xlu0 %v85, 16
  %v380 = vpop.permute.xlu0 %379
  %381 = vrot.lane.b32.xlu0 %v86, 16
  %v382 = vpop.permute.xlu0 %381
  %383 = vrot.lane.b32.xlu0 %v87, 16
  %v384 = vpop.permute.xlu0 %383
  %385 = vrot.lane.b32.xlu0 %v88, 16
  %v386 = vpop.permute.xlu0 %385
  %387 = vrot.lane.b32.xlu0 %v89, 16
  %v388 = vpop.permute.xlu0 %387
  %389 = vrot.lane.b32.xlu0 %v90, 16
  %v390 = vpop.permute.xlu0 %389
  %391 = vrot.lane.b32.xlu0 %v91, 16
  %v392 = vpop.permute.xlu0 %391
  %393 = vrot.lane.b32.xlu0 %v92, 16
  %v394 = vpop.permute.xlu0 %393
  %395 = vrot.lane.b32.xlu0 %v93, 16
  %v396 = vpop.permute.xlu0 %395
  %397 = vrot.lane.b32.xlu0 %v94, 16
  %v398 = vpop.permute.xlu0 %397
  %399 = vrot.lane.b32.xlu0 %v95, 16
  %v400 = vpop.permute.xlu0 %399
  %401 = vrot.lane.b32.xlu0 %v96, 16
  %v402 = vpop.permute.xlu0 %401
  %435 = vrot.lane.b32.xlu0 %v97, 20
  %v436 = vpop.permute.xlu0 %435
  %437 = vrot.lane.b32.xlu0 %v98, 20
  %v438 = vpop.permute.xlu0 %437
  %439 = vrot.lane.b32.xlu0 %v99, 20
  %v440 = vpop.permute.xlu0 %439
  %441 = vrot.lane.b32.xlu0 %v100, 20
  %v442 = vpop.permute.xlu0 %441
  %443 = vrot.lane.b32.xlu0 %v101, 20
  %v444 = vpop.permute.xlu0 %443
  %445 = vrot.lane.b32.xlu0 %v102, 20
  %v446 = vpop.permute.xlu0 %445
  %447 = vrot.lane.b32.xlu0 %v103, 20
  %v448 = vpop.permute.xlu0 %447
  %449 = vrot.lane.b32.xlu0 %v104, 20
  %v450 = vpop.permute.xlu0 %449
  %451 = vrot.lane.b32.xlu0 %v105, 20
  %v452 = vpop.permute.xlu0 %451
  %453 = vrot.lane.b32.xlu0 %v106, 20
  %v454 = vpop.permute.xlu0 %453
  %455 = vrot.lane.b32.xlu0 %v107, 20
  %v456 = vpop.permute.xlu0 %455
  %457 = vrot.lane.b32.xlu0 %v108, 20
  %v458 = vpop.permute.xlu0 %457
  %459 = vrot.lane.b32.xlu0 %v109, 20
  %v460 = vpop.permute.xlu0 %459
  %461 = vrot.lane.b32.xlu0 %v110, 20
  %v462 = vpop.permute.xlu0 %461
  %463 = vrot.lane.b32.xlu0 %v111, 20
  %v464 = vpop.permute.xlu0 %463
  %465 = vrot.lane.b32.xlu0 %v112, 20
  %v466 = vpop.permute.xlu0 %465
  %499 = vrot.lane.b32.xlu0 %v114, 24
  %v500 = vpop.permute.xlu0 %499
  %501 = vrot.lane.b32.xlu0 %v115, 24
  %v502 = vpop.permute.xlu0 %501
  %503 = vrot.lane.b32.xlu0 %v116, 24
  %v504 = vpop.permute.xlu0 %503
  %505 = vrot.lane.b32.xlu0 %v117, 24
  %v506 = vpop.permute.xlu0 %505
  %507 = vrot.lane.b32.xlu0 %v118, 24
  %v508 = vpop.permute.xlu0 %507
  %509 = vrot.lane.b32.xlu0 %v119, 24
  %v510 = vpop.permute.xlu0 %509
  %511 = vrot.lane.b32.xlu0 %v120, 24
  %v512 = vpop.permute.xlu0 %511
  %513 = vrot.lane.b32.xlu0 %v121, 24
  %v514 = vpop.permute.xlu0 %513
  %515 = vrot.lane.b32.xlu0 %v122, 24
  %v516 = vpop.permute.xlu0 %515
  %517 = vrot.lane.b32.xlu0 %v123, 24
  %v518 = vpop.permute.xlu0 %517
  %519 = vrot.lane.b32.xlu0 %v124, 24
  %v520 = vpop.permute.xlu0 %519
  %521 = vrot.lane.b32.xlu0 %v125, 24
  %v522 = vpop.permute.xlu0 %521
  %523 = vrot.lane.b32.xlu0 %v126, 24
  %v524 = vpop.permute.xlu0 %523
  %525 = vrot.lane.b32.xlu0 %v127, 24
  %v526 = vpop.permute.xlu0 %525
  %527 = vrot.lane.b32.xlu0 %v128, 24
  %v528 = vpop.permute.xlu0 %527
  %529 = vrot.lane.b32.xlu0 %v129, 24
  %v530 = vpop.permute.xlu0 %529
  %563 = vrot.lane.b32.xlu0 %v131, 28
  %v564 = vpop.permute.xlu0 %563
  %565 = vrot.lane.b32.xlu0 %v132, 28
  %v566 = vpop.permute.xlu0 %565
  %567 = vrot.lane.b32.xlu0 %v133, 28
  %v568 = vpop.permute.xlu0 %567
  %569 = vrot.lane.b32.xlu0 %v134, 28
  %v570 = vpop.permute.xlu0 %569
  %571 = vrot.lane.b32.xlu0 %v135, 28
  %v572 = vpop.permute.xlu0 %571
  %573 = vrot.lane.b32.xlu0 %v136, 28
  %v574 = vpop.permute.xlu0 %573
  %575 = vrot.lane.b32.xlu0 %v137, 28
  %v576 = vpop.permute.xlu0 %575
  %577 = vrot.lane.b32.xlu0 %v138, 28
  %v578 = vpop.permute.xlu0 %577
  %579 = vrot.lane.b32.xlu0 %v139, 28
  %v580 = vpop.permute.xlu0 %579
  %581 = vrot.lane.b32.xlu0 %v140, 28
  %v582 = vpop.permute.xlu0 %581
  %583 = vrot.lane.b32.xlu0 %v141, 28
  %v584 = vpop.permute.xlu0 %583
  %585 = vrot.lane.b32.xlu0 %v142, 28
  %v586 = vpop.permute.xlu0 %585
  %587 = vrot.lane.b32.xlu0 %v143, 28
  %v588 = vpop.permute.xlu0 %587
  %589 = vrot.lane.b32.xlu0 %v144, 28
  %v590 = vpop.permute.xlu0 %589
  %591 = vrot.lane.b32.xlu0 %v145, 28
  %v592 = vpop.permute.xlu0 %591
  %593 = vrot.lane.b32.xlu0 %v146, 28
  %v594 = vpop.permute.xlu0 %593
  %627 = vrot.lane.b32.xlu0 %v147, 32
  %v628 = vpop.permute.xlu0 %627
  %629 = vrot.lane.b32.xlu0 %v148, 32
  %v630 = vpop.permute.xlu0 %629
  %631 = vrot.lane.b32.xlu0 %v149, 32
  %v632 = vpop.permute.xlu0 %631
  %633 = vrot.lane.b32.xlu0 %v150, 32
  %v634 = vpop.permute.xlu0 %633
  %635 = vrot.lane.b32.xlu0 %v151, 32
  %v636 = vpop.permute.xlu0 %635
  %637 = vrot.lane.b32.xlu0 %v152, 32
  %v638 = vpop.permute.xlu0 %637
  %639 = vrot.lane.b32.xlu0 %v153, 32
  %v640 = vpop.permute.xlu0 %639
  %641 = vrot.lane.b32.xlu0 %v154, 32
  %v642 = vpop.permute.xlu0 %641
  %643 = vrot.lane.b32.xlu0 %v155, 32
  %v644 = vpop.permute.xlu0 %643
  %645 = vrot.lane.b32.xlu0 %v156, 32
  %v646 = vpop.permute.xlu0 %645
  %647 = vrot.lane.b32.xlu0 %v157, 32
  %v648 = vpop.permute.xlu0 %647
  %649 = vrot.lane.b32.xlu0 %v158, 32
  %v650 = vpop.permute.xlu0 %649
  %651 = vrot.lane.b32.xlu0 %v159, 32
  %v652 = vpop.permute.xlu0 %651
  %653 = vrot.lane.b32.xlu0 %v160, 32
  %v654 = vpop.permute.xlu0 %653
  %655 = vrot.lane.b32.xlu0 %v161, 32
  %v656 = vpop.permute.xlu0 %655
  %657 = vrot.lane.b32.xlu0 %v162, 32
  %v658 = vpop.permute.xlu0 %657
  %vm675 = vcmask 31744
  %v676 = vsel %vm675, %v14, %v180
  %v677 = vsel %vm675, %v15, %v182
  %v678 = vsel %vm675, %v16, %v184
  %v679 = vsel %vm675, %v17, %v186
  %v680 = vsel %vm675, %v18, %v188
  %v681 = vsel %vm675, %v19, %v190
  %v682 = vsel %vm675, %v20, %v192
  %v683 = vsel %vm675, %v21, %v194
  %v684 = vsel %vm675, %v22, %v196
  %v685 = vsel %vm675, %v23, %v198
  %v686 = vsel %vm675, %v24, %v200
  %v687 = vsel %vm675, %v25, %v202
  %v688 = vsel %vm675, %v26, %v204
  %v689 = vsel %vm675, %v27, %v206
  %v690 = vsel %vm675, %v28, %v208
  %v691 = vsel %vm675, %v29, %v210
  %vm692 = vcmask 64512
  %v693 = vsel %vm692, %v676, %v244
  %v694 = vsel %vm692, %v677, %v246
  %v695 = vsel %vm692, %v678, %v248
  %v696 = vsel %vm692, %v679, %v250
  %v697 = vsel %vm692, %v680, %v252
  %v698 = vsel %vm692, %v681, %v254
  %v699 = vsel %vm692, %v682, %v256
  %v700 = vsel %vm692, %v683, %v258
  %v701 = vsel %vm692, %v684, %v260
  %v702 = vsel %vm692, %v685, %v262
  %v703 = vsel %vm692, %v686, %v264
  %v704 = vsel %vm692, %v687, %v266
  %v705 = vsel %vm692, %v688, %v268
  %v706 = vsel %vm692, %v689, %v270
  %v707 = vsel %vm692, %v690, %v272
  %v708 = vsel %vm692, %v691, %v274
  %vm709 = vcmask 97280
  %v710 = vsel %vm709, %v693, %v308
  %v711 = vsel %vm709, %v694, %v310
  %v712 = vsel %vm709, %v695, %v312
  %v713 = vsel %vm709, %v696, %v314
  %v714 = vsel %vm709, %v697, %v316
  %v715 = vsel %vm709, %v698, %v318
  %v716 = vsel %vm709, %v699, %v320
  %v717 = vsel %vm709, %v700, %v322
  %v718 = vsel %vm709, %v701, %v324
  %v719 = vsel %vm709, %v702, %v326
  %v720 = vsel %vm709, %v703, %v328
  %v721 = vsel %vm709, %v704, %v330
  %v722 = vsel %vm709, %v705, %v332
  %v723 = vsel %vm709, %v706, %v334
  %v724 = vsel %vm709, %v707, %v336
  %v725 = vsel %vm709, %v708, %v338
  %vm726 = vcmask 130048
  %v727 = vsel %vm726, %v710, %v372
  %v728 = vsel %vm726, %v711, %v374
  %v729 = vsel %vm726, %v712, %v376
  %v730 = vsel %vm726, %v713, %v378
  %v731 = vsel %vm726, %v714, %v380
  %v732 = vsel %vm726, %v715, %v382
  %v733 = vsel %vm726, %v716, %v384
  %v734 = vsel %vm726, %v717, %v386
  %v735 = vsel %vm726, %v718, %v388
  %v736 = vsel %vm726, %v719, %v390
  %v737 = vsel %vm726, %v720, %v392
  %v738 = vsel %vm726, %v721, %v394
  %v739 = vsel %vm726, %v722, %v396
  %v740 = vsel %vm726, %v723, %v398
  %v741 = vsel %vm726, %v724, %v400
  %v742 = vsel %vm726, %v725, %v402
  %vm743 = vcmask 162816
  %v744 = vsel %vm743, %v727, %v436
  %v745 = vsel %vm743, %v728, %v438
  %v746 = vsel %vm743, %v729, %v440
  %v747 = vsel %vm743, %v730, %v442
  %v748 = vsel %vm743, %v731, %v444
  %v749 = vsel %vm743, %v732, %v446
  %v750 = vsel %vm743, %v733, %v448
  %v751 = vsel %vm743, %v734, %v450
  %v752 = vsel %vm743, %v735, %v452
  %v753 = vsel %vm743, %v736, %v454
  %v754 = vsel %vm743, %v737, %v456
  %v755 = vsel %vm743, %v738, %v458
  %v756 = vsel %vm743, %v739, %v460
  %v757 = vsel %vm743, %v740, %v462
  %v758 = vsel %vm743, %v741, %v464
  %v759 = vsel %vm743, %v742, %v466
  %vm760 = vcmask 195584
  %v761 = vsel %vm760, %v744, %v500
  %v762 = vsel %vm760, %v745, %v502
  %v763 = vsel %vm760, %v746, %v504
  %v764 = vsel %vm760, %v747, %v506
  %v765 = vsel %vm760, %v748, %v508
  %v766 = vsel %vm760, %v749, %v510
  %v767 = vsel %vm760, %v750, %v512
  %v768 = vsel %vm760, %v751, %v514
  %v769 = vsel %vm760, %v752, %v516
  %v770 = vsel %vm760, %v753, %v518
  %v771 = vsel %vm760, %v754, %v520
  %v772 = vsel %vm760, %v755, %v522
  %v773 = vsel %vm760, %v756, %v524
  %v774 = vsel %vm760, %v757, %v526
  %v775 = vsel %vm760, %v758, %v528
  %v776 = vsel %vm760, %v759, %v530
  %vm777 = vcmask 228352
  %v778 = vsel %vm777, %v761, %v564
  %v779 = vsel %vm777, %v762, %v566
  %v780 = vsel %vm777, %v763, %v568
  %v781 = vsel %vm777, %v764, %v570
  %v782 = vsel %vm777, %v765, %v572
  %v783 = vsel %vm777, %v766, %v574
  %v784 = vsel %vm777, %v767, %v576
  %v785 = vsel %vm777, %v768, %v578
  %v786 = vsel %vm777, %v769, %v580
  %v787 = vsel %vm777, %v770, %v582
  %v788 = vsel %vm777, %v771, %v584
  %v789 = vsel %vm777, %v772, %v586
  %v790 = vsel %vm777, %v773, %v588
  %v791 = vsel %vm777, %v774, %v590
  %v792 = vsel %vm777, %v775, %v592
  %v793 = vsel %vm777, %v776, %v594
  %vm794 = vcmask 261120
  %v795 = vsel %vm794, %v778, %v628
  %v796 = vsel %vm794, %v779, %v630
  %v797 = vsel %vm794, %v780, %v632
  %v798 = vsel %vm794, %v781, %v634
  %v799 = vsel %vm794, %v782, %v636
  %v800 = vsel %vm794, %v783, %v638
  %v801 = vsel %vm794, %v784, %v640
  %v802 = vsel %vm794, %v785, %v642
  %v803 = vsel %vm794, %v786, %v644
  %v804 = vsel %vm794, %v787, %v646
  %v805 = vsel %vm794, %v788, %v648
  %v806 = vsel %vm794, %v789, %v650
  %v807 = vsel %vm794, %v790, %v652
  %v808 = vsel %vm794, %v791, %v654
  %v809 = vsel %vm794, %v792, %v656
  %v810 = vsel %vm794, %v793, %v658
  %v811 = vld [vmem:[%s1] sm:$0xff]
  %vm812 = vcmask 293888
  %v814 = vsel %vm812, %v811, 0
  %v817 = vsel %vm812, %v795, 0
  %v820 = vsel %vm812, %v796, 0
  %v823 = vsel %vm812, %v797, 0
  %v826 = vsel %vm812, %v798, 0
  %v829 = vsel %vm812, %v799, 0
  %v832 = vsel %vm812, %v800, 0
  %v835 = vsel %vm812, %v801, 0
  %v838 = vsel %vm812, %v802, 0
  %v841 = vsel %vm812, %v803, 0
  %v844 = vsel %vm812, %v804, 0
  %v847 = vsel %vm812, %v805, 0
  %v850 = vsel %vm812, %v806, 0
  %v853 = vsel %vm812, %v807, 0
  %v856 = vsel %vm812, %v808, 0
  %v859 = vsel %vm812, %v809, 0
  %v862 = vsel %vm812, %v810, 0
  %864 = vmatprep.subr.mxu0 0.0
  %865 = vmatpush1.xpose.msra.mxu0 %v862
  %866 = vmatprep.subr.mxu0 0.0
  %867 = vmatpush1.xpose.msra.mxu0 %v859
  %868 = vmatprep.subr.mxu0 0.0
  %869 = vmatpush1.xpose.msra.mxu0 %v856
  %870 = vmatprep.subr.mxu0 0.0
  %871 = vmatpush1.xpose.msra.mxu0 %v853
  %872 = vmatprep.subr.mxu0 0.0
  %873 = vmatpush1.xpose.msra.mxu0 %v850
  %874 = vmatprep.subr.mxu0 0.0
  %875 = vmatpush1.xpose.msra.mxu0 %v847
  %876 = vmatprep.subr.mxu0 0.0
  %877 = vmatpush1.xpose.msra.mxu0 %v844
  %878 = vmatprep.subr.mxu0 0.0
  %879 = vmatpush1.xpose.msra.mxu0 %v841
  %880 = vmatprep.subr.mxu0 0.0
  %881 = vmatpush1.xpose.msra.mxu0 %v838
  %882 = vmatprep.subr.mxu0 0.0
  %883 = vmatpush1.xpose.msra.mxu0 %v835
  %884 = vmatprep.subr.mxu0 0.0
  %885 = vmatpush1.xpose.msra.mxu0 %v832
  %886 = vmatprep.subr.mxu0 0.0
  %887 = vmatpush1.xpose.msra.mxu0 %v829
  %888 = vmatprep.subr.mxu0 0.0
  %889 = vmatpush1.xpose.msra.mxu0 %v826
  %890 = vmatprep.subr.mxu0 0.0
  %891 = vmatpush1.xpose.msra.mxu0 %v823
  %892 = vmatprep.subr.mxu0 0.0
  %893 = vmatpush1.xpose.msra.mxu0 %v820
  %894 = vmatprep.subr.mxu0 0.0
  %895 = vmatpush1.xpose.msra.mxu0 %v817
  %896 = vmatprep.subr.mxu0 0.0
  %897 = vmatpush2.xpose.msra.mxu0 0.0
  %898 = vmatprep.subr.mxu0 0.0
  %899 = vmatpush2.xpose.msra.mxu0 0.0
  %900 = vmatprep.subr.mxu0 0.0
  %901 = vmatpush2.xpose.msra.mxu0 0.0
  %902 = vmatprep.subr.mxu0 0.0
  %903 = vmatpush2.xpose.msra.mxu0 0.0
  %904 = vmatprep.subr.mxu0 0.0
  %905 = vmatpush2.xpose.msra.mxu0 0.0
  %906 = vmatprep.subr.mxu0 0.0
  %907 = vmatpush2.xpose.msra.mxu0 0.0
  %908 = vmatprep.subr.mxu0 0.0
  %909 = vmatpush2.xpose.msra.mxu0 0.0
  %910 = vmatprep.subr.mxu0 0.0
  %911 = vmatpush2.xpose.msra.mxu0 0.0
  %912 = vmatprep.subr.mxu0 0.0
  %913 = vmatpush2.xpose.msra.mxu0 0.0
  %914 = vmatprep.subr.mxu0 0.0
  %915 = vmatpush2.xpose.msra.mxu0 0.0
  %916 = vmatprep.subr.mxu0 0.0
  %917 = vmatpush2.xpose.msra.mxu0 0.0
  %918 = vmatprep.subr.mxu0 0.0
  %919 = vmatpush2.xpose.msra.mxu0 0.0
  %920 = vmatprep.subr.mxu0 0.0
  %921 = vmatpush2.xpose.msra.mxu0 0.0
  %922 = vmatprep.subr.mxu0 0.0
  %923 = vmatpush2.xpose.msra.mxu0 0.0
  %924 = vmatprep.subr.mxu0 0.0
  %925 = vmatpush2.xpose.msra.mxu0 0.0
  %926 = vmatprep.subr.mxu0 0.0
  %927 = vmatpush2.xpose.msra.mxu0 0.0
  %928 = vmatprep.mubr.f32.mxu0 0.0
  %929 = vmatmul.mubr.f32.gmra.mxu0 %v814
  %v930 = vpop.f32.mrf.mxu0
  %v931 = vadd.f32 0.0, %v930
  %v932 = vpop.f32.mrf.mxu0
  %933 = vdwg.mxu0
  %934 = vadd.xlane.f32.xlu0 %v931
  %v935 = vpop.xlane.xlu0 %934
  %v936 = vrcp.pop 128.0
  %v937 = vmul.f32 %v935, %v936
  %v938 = vsub.f32 %v931, %v937
  %v939 = vmul.f32 %v938, %v938
  %940 = vadd.xlane.f32.xlu0 %v939
  %v941 = vpop.xlane.xlu0 %940
  %v942 = vmul.f32 %v941, %v936
  %v943 = vld [vmem:[%s2] sm:$0xff]
  %s944 = scalar_lea.vmem %s2, 8
  %v945 = vld [vmem:[%s944] sm:$0xff]
  %v946 = vadd.f32 %v942, 1e-05
  %v947 = vrsqrt.pop %v946
  %v948 = vmul.f32 %v938, %v947
  %950 = vset.pattern.permute.xlu0 0
  %951 = vperm.xlu0 %950, %v943
  %v952 = vpop.permute.xlu0 %951
  %v954 = vmul.f32 %v948, %v952
  %956 = vset.pattern.permute.xlu0 0
  %957 = vperm.xlu0 %956, %v945
  %v958 = vpop.permute.xlu0 %957
  %v960 = vadd.f32 %v954, %v958
  %v961 = vmax.f32 %v960, 0.0
  %vm962 = vcmask 523264
  %963 = vst.msk [vmem:[%s3] sm:$0xff] %vm962, %v961
  %965 = vrot.lane.b32.xlu0 %v961, 64
  %v966 = vpop.permute.xlu0 %965
  %s968 = scalar_lea.vmem %s3, 8
  %969 = vst.msk [vmem:[%s968] sm:$0xff] %vm962, %v966
  // Predicated region
  $region14: #{convblock_forward.1} parent=0 // pred_check
    _
  $region15: #{convblock_forward.1} parent=0 // pred_check_branch
    %971 = sbr.rel (0) target = $region17
  $region16: #{convblock_forward.1} parent=0 // pred_region
    _
  $region17: #{convblock_forward.1} parent=0 // pred_fallthru
    _
  // Predicated region
  $region18: #{convblock_forward.1} parent=0 // pred_check
    _
  $region19: #{convblock_forward.1} parent=0 // pred_check_branch
    %973 = sbr.rel (0) target = $region21
  $region20: #{convblock_forward.1} parent=0 // pred_region
    _
  $region21: #{convblock_forward.1} parent=0 // pred_fallthru
    _

</llo_original>
